<compile_context>
chip_gen: v5e
topology: v5e:2x2
jax: 0.10.0
libtpu: 0.0.40
codegen_flags: <defaults>
</compile_context>

<pallas_src>
import functools
import math

import jax
import jax.numpy as jnp
import numpy as np
from jax.experimental import pallas as pl
from jax.experimental.pallas import tpu as pltpu


def _round_up(a, m):
    return ((a + m - 1) // m) * m


def _vmem_info():
    """Returns (per-step VMEM budget, physical VMEM bytes, multi-TensorCore?)."""
    cap = 128 << 20
    try:
        cap = int(pltpu.get_tpu_info().vmem_capacity_bytes)
    except Exception:
        pass
    if cap <= (64 << 20):            # v7x-class: 64 MiB VMEM/TC, 2 TCs/chip
        return (24 << 20), cap, True
    return (72 << 20), cap, False    # v5e / v6e: 128 MiB VMEM, 1 TC/chip


def _cplx_conv1d_kernel(x_ref, w_ref, b_ref, o_ref, acc_ref, *,
                        K, dilation, B_blk, S):
    # x_ref  : (2*C_in, W)           lane-packed stacked input; sample s lives
    #                                in lanes [s*S, s*S + L_pad), zero padded
    # w_ref  : (K, 2*C_out, 2*C_in)  per-tap stacked complex weight
    # b_ref  : (2*C_out, 1)          stacked bias (br - bi ; br + bi)
    # o_ref  : (B_blk, 2*C_out, S)   per-sample output planes (f32)
    # acc_ref: (2*C_out, B_blk*S)    f32 accumulator scratch (VMEM)
    n_lanes = B_blk * S

    # Bias folded into accumulator init (replaces a zeros-init + add pass).
    acc_ref[...] = jnp.broadcast_to(b_ref[...], acc_ref.shape)

    # K accumulated channel-contraction matmuls; each tap is ONE lane-shifted
    # slice of the whole packed block (no im2col, no concatenates).
    for k in range(K):                                    # K small, static
        xk = x_ref[:, pl.ds(k * dilation, n_lanes)]       # (2*C_in, B_blk*S)
        acc_ref[...] += jnp.dot(w_ref[k], xk,
                                preferred_element_type=jnp.float32)

    # 128-aligned per-sample stores -> unmasked vst; wrapper unpack is a plain
    # reshape + slice (no HBM transpose of the output).
    for s in range(B_blk):                                # static offsets
        o_ref[s] = acc_ref[:, pl.ds(s * S, S)].astype(o_ref.dtype)


@functools.partial(jax.jit,
                   static_argnames=("padding", "dilation", "block_b",
                                    "compute_dtype"))
def complex_conv1d(x, weight, bias=None, *, padding=0, dilation=1,
                   block_b=None, compute_dtype=jnp.float32):
    """x: complex (N, C_in, L); weight: complex (C_out, C_in, K);
    bias: complex (C_out,) or None.  stride=1, groups=1, zero padding."""
    N, C_in, L = x.shape
    C_out, C_in_w, K = weight.shape
    if C_in_w != C_in:
        raise ValueError("groups != 1 is not supported by this kernel")
    if padding < 0 or dilation < 1:
        raise ValueError("invalid padding/dilation")

    L_pad = L + 2 * padding
    L_out = L_pad - dilation * (K - 1)
    if L_out <= 0:
        raise ValueError(f"non-positive output length L_out={L_out}")

    # Per-sample lane slot; input and output slots must match for the
    # shifted-tap trick, and a multiple of 128 keeps every slice lane-aligned.
    S = _round_up(L_pad, 128)
    isz = jnp.dtype(compute_dtype).itemsize
    budget, cap, multi_tc = _vmem_info()

    def block_bytes(bb):
        lanes = bb * S
        W = _round_up(lanes + (K - 1) * dilation, 128)
        in_b = 2 * (2 * C_in) * W * isz          # double-buffered input block
        out_b = 2 * bb * (2 * C_out) * S * 4     # double-buffered f32 output
        acc_b = (2 * C_out) * lanes * 4          # accumulator scratch
        w_b = 2 * (K * (2 * C_out) * (2 * C_in) * isz + (2 * C_out) * 4)
        return in_b + out_b + acc_b + w_b

    if block_b is not None:
        bb = max(1, min(int(block_b), N))
    else:
        per_sample = max(1, block_bytes(2) - block_bytes(1))
        bb = max(1, min(N, budget // per_sample))
        # 8192 lanes per block is already well past the DMA-efficiency knee
        # and keeps the unrolled per-sample store loop small.
        bb = min(bb, max(1, 8192 // S))
        while bb > 1 and block_bytes(bb) > budget:
            bb -= 1
        if multi_tc and N >= 2:                  # >=2 blocks so both v7x TCs work
            bb = min(bb, -(-N // 2))
    n_blocks = -(-N // bb)
    N_pad = n_blocks * bb

    n_lanes = bb * S
    W = _round_up(n_lanes + (K - 1) * dilation, 128)

    # ---- lane-packed stacked input: (n_blocks * 2*C_in, W) ------------------
    xr = jnp.real(x).astype(jnp.float32)
    xi = jnp.imag(x).astype(jnp.float32)
    x2 = jnp.concatenate([xr, xi], axis=1)                     # (N, 2C_in, L)
    x2 = jnp.pad(x2, ((0, N_pad - N), (0, 0),
                      (padding, padding + (S - L_pad))))       # (N_pad, 2C_in, S)
    x2 = x2.reshape(n_blocks, bb, 2 * C_in, S)
    x2 = jnp.transpose(x2, (0, 2, 1, 3)).reshape(n_blocks, 2 * C_in, n_lanes)
    x2 = jnp.pad(x2, ((0, 0), (0, 0), (0, W - n_lanes)))
    x2 = x2.reshape(n_blocks * 2 * C_in, W).astype(compute_dtype)

    # ---- per-tap stacked weight: (K, 2*C_out, 2*C_in) -----------------------
    wr = jnp.real(weight).astype(jnp.float32)                  # (C_out, C_in, K)
    wi = jnp.imag(weight).astype(jnp.float32)
    top = jnp.concatenate([wr, -wi], axis=1)                   # (C_out, 2C_in, K)
    bot = jnp.concatenate([wi, wr], axis=1)
    w2 = jnp.concatenate([top, bot], axis=0)                   # (2C_out, 2C_in, K)
    w2 = jnp.transpose(w2, (2, 0, 1)).astype(compute_dtype)    # (K, 2C_out, 2C_in)

    # ---- stacked bias: re half gets (br - bi), im half gets (br + bi) -------
    if bias is None:
        b2 = jnp.zeros((2 * C_out, 1), jnp.float32)
    else:
        br = jnp.real(bias).astype(jnp.float32)
        bi = jnp.imag(bias).astype(jnp.float32)
        b2 = jnp.concatenate([br - bi, br + bi]).reshape(2 * C_out, 1)

    kernel = functools.partial(_cplx_conv1d_kernel,
                               K=K, dilation=dilation, B_blk=bb, S=S)
    vmem_limit = int(min(cap, max(32 << 20, block_bytes(bb) + (8 << 20))))

    out = pl.pallas_call(
        kernel,
        out_shape=jax.ShapeDtypeStruct((N_pad, 2 * C_out, S), jnp.float32),
        grid=(n_blocks,),
        in_specs=[
            pl.BlockSpec((2 * C_in, W), lambda b: (b, 0)),
            pl.BlockSpec((K, 2 * C_out, 2 * C_in), lambda b: (0, 0, 0)),
            pl.BlockSpec((2 * C_out, 1), lambda b: (0, 0)),
        ],
        out_specs=pl.BlockSpec((bb, 2 * C_out, S), lambda b: (b, 0, 0)),
        scratch_shapes=[pltpu.VMEM((2 * C_out, n_lanes), jnp.float32)],
        compiler_params=pltpu.CompilerParams(
            dimension_semantics=("parallel",),
            vmem_limit_bytes=vmem_limit),
    )(x2, w2, b2)

    # unpack: (N_pad, 2*C_out, S) -> complex (N, C_out, L_out); reshape + slice
    out = out[:N, :, :L_out].reshape(N, 2, C_out, L_out)
    return (out[:, 0] + 1j * out[:, 1]).astype(jnp.complex64)


def _reference(x, weight, bias, *, padding=0, dilation=1):
    """Pure-JAX reference reproducing merlinth.complex_conv(F.conv1d, ...)."""
    def conv(a, w, b):
        out = jax.lax.conv_general_dilated(
            a, w, window_strides=(1,), padding=[(padding, padding)],
            rhs_dilation=(dilation,), dimension_numbers=("NCH", "OIH", "NCH"))
        if b is not None:
            out = out + b[None, :, None]
        return out

    xr, xi = jnp.real(x), jnp.imag(x)
    wr, wi = jnp.real(weight), jnp.imag(weight)
    br = jnp.real(bias) if bias is not None else None
    bi = jnp.imag(bias) if bias is not None else None
    conv_rr = conv(xr, wr, br)
    conv_ii = conv(xi, wi, bi)
    conv_ri = conv(xr, wi, bi)
    conv_ir = conv(xi, wr, br)
    return (conv_rr - conv_ii) + 1j * (conv_ir + conv_ri)


if __name__ == "__main__":
    # ComplexConv1d(in_channels=4, out_channels=8, kernel_size=3, bias=True)
    N, C_in, C_out, L, K = 2, 4, 8, 16, 3

    key = jax.random.PRNGKey(0)
    k_xr, k_xi, k_wr, k_wi, k_br, k_bi, k_x3r, k_x3i = jax.random.split(key, 8)

    # deterministic "kaiming_uniform(a=sqrt(5))"-style init: U(-1/sqrt(fan_in), +)
    fan_in = C_in * K
    bound = 1.0 / math.sqrt(fan_in)

    x = (jax.random.normal(k_xr, (N, C_in, L), jnp.float32)
         + 1j * jax.random.normal(k_xi, (N, C_in, L), jnp.float32)
         ).astype(jnp.complex64)
    weight = (jax.random.uniform(k_wr, (C_out, C_in, K), jnp.float32, -bound, bound)
              + 1j * jax.random.uniform(k_wi, (C_out, C_in, K), jnp.float32, -bound, bound)
              ).astype(jnp.complex64)
    bias = (jax.random.uniform(k_br, (C_out,), jnp.float32, -bound, bound)
            + 1j * jax.random.uniform(k_bi, (C_out,), jnp.float32, -bound, bound)
            ).astype(jnp.complex64)

    # default config + a padded/dilated config
    for padding, dilation in [(0, 1), (1, 2)]:
        out = complex_conv1d(x, weight, bias, padding=padding, dilation=dilation)
        out = jax.block_until_ready(out)
        ref = _reference(x, weight, bias, padding=padding, dilation=dilation)
        np.testing.assert_allclose(np.asarray(out), np.asarray(ref),
                                   rtol=1e-4, atol=1e-4)

    # bias=False path
    out = complex_conv1d(x, weight, None, padding=1, dilation=1)
    out = jax.block_until_ready(out)
    ref = _reference(x, weight, None, padding=1, dilation=1)
    np.testing.assert_allclose(np.asarray(out), np.asarray(ref),
                               rtol=1e-4, atol=1e-4)

    # odd batch + explicit block size -> exercises multi-block grid and the
    # padded-batch / lane-packed unpack paths
    x3 = (jax.random.normal(k_x3r, (3, C_in, L), jnp.float32)
          + 1j * jax.random.normal(k_x3i, (3, C_in, L), jnp.float32)
          ).astype(jnp.complex64)
    out = complex_conv1d(x3, weight, bias, padding=1, dilation=1, block_b=2)
    out = jax.block_until_ready(out)
    ref = _reference(x3, weight, bias, padding=1, dilation=1)
    np.testing.assert_allclose(np.asarray(out), np.asarray(ref),
                               rtol=1e-4, atol=1e-4)

    print("KERNEL_OK")
</pallas_src>

<mosaic_0001>
module attributes {stable_mosaic.version = 11 : i64} {
  func.func @_cplx_conv1d_kernel(%arg0: i32, %arg1: memref<8x384xf32, #tpu.memory_space<vmem>>, %arg2: memref<3x16x8xf32, #tpu.memory_space<vmem>>, %arg3: memref<16x1xf32, #tpu.memory_space<vmem>>, %arg4: memref<2x16x128xf32, #tpu.memory_space<vmem>>, %arg5: memref<16x256xf32, #tpu.memory_space<vmem>>) attributes {dimension_semantics = [#tpu.dimension_semantics<parallel>], iteration_bounds = array<i64: 1>, scalar_prefetch = 0 : i64, scratch_operands = 1 : i64, tpu.core_type = #tpu.core_type<tc>, window_params = [{transform_indices = @transform_0, window_bounds = array<i64: 8, 384>}, {pipeline_mode = #tpu.pipeline_mode<synchronous>, transform_indices = @transform_1, window_bounds = array<i64: 3, 16, 8>}, {pipeline_mode = #tpu.pipeline_mode<synchronous>, transform_indices = @transform_2, window_bounds = array<i64: 16, 1>}, {transform_indices = @transform_3, window_bounds = array<i64: 2, 16, 128>}]} {
    %c0 = arith.constant 0 : index
    %c0_0 = arith.constant 0 : index
    %0 = vector.load %arg3[%c0, %c0_0] : memref<16x1xf32, #tpu.memory_space<vmem>>, vector<16x1xf32>
    %1 = vector.shape_cast %0 : vector<16x1xf32> to vector<16x1xf32>
    %2 = vector.broadcast %1 : vector<16x1xf32> to vector<16x256xf32>
    %c0_1 = arith.constant 0 : index
    %c0_2 = arith.constant 0 : index
    %3 = vector.load %arg5[%c0_1, %c0_2] : memref<16x256xf32, #tpu.memory_space<vmem>>, vector<16x256xf32>
    tpu.vector_store %arg5[%c0_1, %c0_2], %2 {strides = array<i32>} : memref<16x256xf32, #tpu.memory_space<vmem>>, vector<16x256xf32>,
    %c0_3 = arith.constant 0 : index
    %c0_4 = arith.constant 0 : index
    %4 = vector.load %arg1[%c0_3, %c0_4] : memref<8x384xf32, #tpu.memory_space<vmem>>, vector<8x256xf32>
    %c0_5 = arith.constant 0 : index
    %c0_6 = arith.constant 0 : index
    %5 = vector.load %arg5[%c0_5, %c0_6] : memref<16x256xf32, #tpu.memory_space<vmem>>, vector<16x256xf32>
    %c0_7 = arith.constant 0 : index
    %c0_8 = arith.constant 0 : index
    %c0_9 = arith.constant 0 : index
    %6 = vector.load %arg2[%c0_7, %c0_8, %c0_9] : memref<3x16x8xf32, #tpu.memory_space<vmem>>, vector<1x16x8xf32>
    %7 = vector.shape_cast %6 : vector<1x16x8xf32> to vector<16x8xf32>
    %cst = arith.constant dense<0.000000e+00> : vector<16x256xf32>
    %8 = tpu.matmul %7, %4, %cst {dimension_numbers = #tpu.dot_dimension_numbers<[1], [0], [0], [1], [0, 0, 1, 1], [], []>} : vector<16x8xf32>, vector<8x256xf32>, vector<16x256xf32> -> vector<16x256xf32>
    %9 = arith.addf %5, %8 : vector<16x256xf32>
    %c0_10 = arith.constant 0 : index
    %c0_11 = arith.constant 0 : index
    %10 = vector.load %arg5[%c0_10, %c0_11] : memref<16x256xf32, #tpu.memory_space<vmem>>, vector<16x256xf32>
    tpu.vector_store %arg5[%c0_10, %c0_11], %9 {strides = array<i32>} : memref<16x256xf32, #tpu.memory_space<vmem>>, vector<16x256xf32>,
    %c0_12 = arith.constant 0 : index
    %c1 = arith.constant 1 : index
    %11 = vector.load %arg1[%c0_12, %c1] : memref<8x384xf32, #tpu.memory_space<vmem>>, vector<8x256xf32>
    %c0_13 = arith.constant 0 : index
    %c0_14 = arith.constant 0 : index
    %12 = vector.load %arg5[%c0_13, %c0_14] : memref<16x256xf32, #tpu.memory_space<vmem>>, vector<16x256xf32>
    %c1_15 = arith.constant 1 : index
    %c0_16 = arith.constant 0 : index
    %c0_17 = arith.constant 0 : index
    %13 = vector.load %arg2[%c1_15, %c0_16, %c0_17] : memref<3x16x8xf32, #tpu.memory_space<vmem>>, vector<1x16x8xf32>
    %14 = vector.shape_cast %13 : vector<1x16x8xf32> to vector<16x8xf32>
    %cst_18 = arith.constant dense<0.000000e+00> : vector<16x256xf32>
    %15 = tpu.matmul %14, %11, %cst_18 {dimension_numbers = #tpu.dot_dimension_numbers<[1], [0], [0], [1], [0, 0, 1, 1], [], []>} : vector<16x8xf32>, vector<8x256xf32>, vector<16x256xf32> -> vector<16x256xf32>
    %16 = arith.addf %12, %15 : vector<16x256xf32>
    %c0_19 = arith.constant 0 : index
    %c0_20 = arith.constant 0 : index
    %17 = vector.load %arg5[%c0_19, %c0_20] : memref<16x256xf32, #tpu.memory_space<vmem>>, vector<16x256xf32>
    tpu.vector_store %arg5[%c0_19, %c0_20], %16 {strides = array<i32>} : memref<16x256xf32, #tpu.memory_space<vmem>>, vector<16x256xf32>,
    %c0_21 = arith.constant 0 : index
    %c2 = arith.constant 2 : index
    %18 = vector.load %arg1[%c0_21, %c2] : memref<8x384xf32, #tpu.memory_space<vmem>>, vector<8x256xf32>
    %c0_22 = arith.constant 0 : index
    %c0_23 = arith.constant 0 : index
    %19 = vector.load %arg5[%c0_22, %c0_23] : memref<16x256xf32, #tpu.memory_space<vmem>>, vector<16x256xf32>
    %c2_24 = arith.constant 2 : index
    %c0_25 = arith.constant 0 : index
    %c0_26 = arith.constant 0 : index
    %20 = vector.load %arg2[%c2_24, %c0_25, %c0_26] : memref<3x16x8xf32, #tpu.memory_space<vmem>>, vector<1x16x8xf32>
    %21 = vector.shape_cast %20 : vector<1x16x8xf32> to vector<16x8xf32>
    %cst_27 = arith.constant dense<0.000000e+00> : vector<16x256xf32>
    %22 = tpu.matmul %21, %18, %cst_27 {dimension_numbers = #tpu.dot_dimension_numbers<[1], [0], [0], [1], [0, 0, 1, 1], [], []>} : vector<16x8xf32>, vector<8x256xf32>, vector<16x256xf32> -> vector<16x256xf32>
    %23 = arith.addf %19, %22 : vector<16x256xf32>
    %c0_28 = arith.constant 0 : index
    %c0_29 = arith.constant 0 : index
    %24 = vector.load %arg5[%c0_28, %c0_29] : memref<16x256xf32, #tpu.memory_space<vmem>>, vector<16x256xf32>
    tpu.vector_store %arg5[%c0_28, %c0_29], %23 {strides = array<i32>} : memref<16x256xf32, #tpu.memory_space<vmem>>, vector<16x256xf32>,
    %c0_30 = arith.constant 0 : index
    %c0_31 = arith.constant 0 : index
    %25 = vector.load %arg5[%c0_30, %c0_31] : memref<16x256xf32, #tpu.memory_space<vmem>>, vector<16x128xf32>
    %c0_32 = arith.constant 0 : index
    %c0_33 = arith.constant 0 : index
    %c0_34 = arith.constant 0 : index
    %26 = vector.load %arg4[%c0_32, %c0_33, %c0_34] : memref<2x16x128xf32, #tpu.memory_space<vmem>>, vector<1x16x128xf32>
    %27 = vector.shape_cast %26 : vector<1x16x128xf32> to vector<16x128xf32>
    %28 = vector.shape_cast %25 : vector<16x128xf32> to vector<1x16x128xf32>
    tpu.vector_store %arg4[%c0_32, %c0_33, %c0_34], %28 {strides = array<i32>} : memref<2x16x128xf32, #tpu.memory_space<vmem>>, vector<1x16x128xf32>,
    %c0_35 = arith.constant 0 : index
    %c128 = arith.constant 128 : index
    %29 = vector.load %arg5[%c0_35, %c128] : memref<16x256xf32, #tpu.memory_space<vmem>>, vector<16x128xf32>
    %c1_36 = arith.constant 1 : index
    %c0_37 = arith.constant 0 : index
    %c0_38 = arith.constant 0 : index
    %30 = vector.load %arg4[%c1_36, %c0_37, %c0_38] : memref<2x16x128xf32, #tpu.memory_space<vmem>>, vector<1x16x128xf32>
    %31 = vector.shape_cast %30 : vector<1x16x128xf32> to vector<16x128xf32>
    %32 = vector.shape_cast %29 : vector<16x128xf32> to vector<1x16x128xf32>
    tpu.vector_store %arg4[%c1_36, %c0_37, %c0_38], %32 {strides = array<i32>} : memref<2x16x128xf32, #tpu.memory_space<vmem>>, vector<1x16x128xf32>,
    return
  }
  func.func @transform_0(%arg0: i32) -> (i32, i32) {
    %c0_i32 = arith.constant 0 : i32
    %c0_i32_0 = arith.constant 0 : i32
    return %arg0, %c0_i32 : i32, i32
  }
  func.func @transform_1(%arg0: i32) -> (i32, i32, i32) {
    %c0_i32 = arith.constant 0 : i32
    %c0_i32_0 = arith.constant 0 : i32
    %c0_i32_1 = arith.constant 0 : i32
    %c0_i32_2 = arith.constant 0 : i32
    return %c0_i32, %c0_i32_0, %c0_i32_1 : i32, i32, i32
  }
  func.func @transform_2(%arg0: i32) -> (i32, i32) {
    %c0_i32 = arith.constant 0 : i32
    %c0_i32_0 = arith.constant 0 : i32
    %c0_i32_1 = arith.constant 0 : i32
    return %c0_i32, %c0_i32_0 : i32, i32
  }
  func.func @transform_3(%arg0: i32) -> (i32, i32, i32) {
    %c0_i32 = arith.constant 0 : i32
    %c0_i32_0 = arith.constant 0 : i32
    %c0_i32_1 = arith.constant 0 : i32
    return %arg0, %c0_i32, %c0_i32_0 : i32, i32, i32
  }
}

</mosaic_0001>

<llo_original>
// kernel: custom-call.3
$region0: #{custom-call.3}
  %s0 = inlined_call_operand.vmem [shape: c64[8,4,3], index: 0, kind: input, shape index: {}]
  %s1 = inlined_call_operand.vmem [shape: f32[8,4,3], index: 1, kind: output, shape index: {}]
  %s2 = scalar_lea.vmem %s0, 24
  %v3 = vld [vmem:[%s2] sm:$0xff]
  %4 = vst [vmem:[%s1] sm:$0xff] %v3
  %s5 = scalar_lea.vmem %s1, 8
  %s6 = scalar_lea.vmem %s2, 8
  %v7 = vld [vmem:[%s6] sm:$0xff]
  %8 = vst [vmem:[%s5] sm:$0xff] %v7
  %s9 = scalar_lea.vmem %s1, 16
  %s10 = scalar_lea.vmem %s2, 16
  %v11 = vld [vmem:[%s10] sm:$0xff]
  %12 = vst [vmem:[%s9] sm:$0xff] %v11

// kernel: custom-call.2
$region0: #{custom-call.2}
  %s0 = inlined_call_operand.vmem [shape: c64[8,4,3], index: 0, kind: input, shape index: {}]
  %s1 = inlined_call_operand.vmem [shape: f32[8,4,3], index: 1, kind: output, shape index: {}]
  %v2 = vld [vmem:[%s0] sm:$0xff]
  %3 = vst [vmem:[%s1] sm:$0xff] %v2
  %s4 = scalar_lea.vmem %s1, 8
  %s5 = scalar_lea.vmem %s0, 8
  %v6 = vld [vmem:[%s5] sm:$0xff]
  %7 = vst [vmem:[%s4] sm:$0xff] %v6
  %s8 = scalar_lea.vmem %s1, 16
  %s9 = scalar_lea.vmem %s0, 16
  %v10 = vld [vmem:[%s9] sm:$0xff]
  %11 = vst [vmem:[%s8] sm:$0xff] %v10

// kernel: neg.1
$region0: #{neg.1}
  #allocation0 [shape = 's32[1]{0}', space=sflag, size = 0x4, scoped, tag = 'scoped memory for neg.1']
  %s0 = inlined_call_operand.vmem [shape: f32[8,4,3], index: 0, kind: input, shape index: {}]
  %s1 = inlined_call_operand.vmem [shape: f32[8,4,3], index: 1, kind: output, shape index: {}]
  %v2 = vld [vmem:[%s0] sm:$0xff]
  %3 = xla_tuple %v2
  %4 = xla_tuple %3
  %v5 = vxor.u32 %v2, 2147483648
  %6 = xla_tuple %v5
  %7 = vst [vmem:[%s1] sm:$0xff] %v5
  %s8 = scalar_lea.vmem %s0, 8
  %v9 = vld [vmem:[%s8] sm:$0xff]
  %10 = xla_tuple %v9
  %11 = xla_tuple %10
  %v12 = vxor.u32 %v9, 2147483648
  %13 = xla_tuple %v12
  %s14 = scalar_lea.vmem %s1, 8
  %15 = vst [vmem:[%s14] sm:$0xff] %v12
  %s16 = scalar_lea.vmem %s0, 16
  %v17 = vld [vmem:[%s16] sm:$0xff]
  %18 = xla_tuple %v17
  %19 = xla_tuple %18
  %v20 = vxor.u32 %v17, 2147483648
  %21 = xla_tuple %v20
  %s22 = scalar_lea.vmem %s1, 16
  %23 = vst [vmem:[%s22] sm:$0xff] %v20

// kernel: custom-call.4
$region0: #{custom-call.4}
  %s0 = inlined_call_operand.hbm [shape: c64[8], index: 0, kind: input, shape index: {}]
  %s1 = inlined_call_operand.vmem [shape: f32[8], index: 1, kind: output, shape index: {}]
  $region1: #{custom-call.4} parent=0
    #allocation0 [shape = 's32[1]{0}', space=sflag, size = 0x4, scoped, tag = 'scoped memory for custom-call.4']
    %2 = vsyncpa [#allocation0], 0
    %s4 = sshll.u32 %s0, 4
    %s5 = int_to_ptr.hbm [resolvable:$true] %s4
    %s6 = sshll.u32 %s1, 4
    %s7 = int_to_ptr.vmem [resolvable:$true] %s6
    %9 = dma.hbm_to_vmem [thread:$0]  %s5, 16, %s7, [#allocation0]
    %11 = dma.done [#allocation0], 16
    %12 = vsyncpa [#allocation0], 1

// kernel: custom-call.5
$region0: #{custom-call.5}
  %s0 = inlined_call_operand.hbm [shape: c64[8], index: 0, kind: input, shape index: {}]
  %s1 = inlined_call_operand.vmem [shape: f32[8], index: 1, kind: output, shape index: {}]
  %s2 = scalar_lea.hbm %s0, 1
  $region1: #{custom-call.5} parent=0
    #allocation0 [shape = 's32[1]{0}', space=sflag, size = 0x4, scoped, tag = 'scoped memory for custom-call.5']
    %3 = vsyncpa [#allocation0], 0
    %s5 = sshll.u32 %s2, 4
    %s6 = int_to_ptr.hbm [resolvable:$true] %s5
    %s7 = sshll.u32 %s1, 4
    %s8 = int_to_ptr.vmem [resolvable:$true] %s7
    %10 = dma.hbm_to_vmem [thread:$0]  %s6, 16, %s8, [#allocation0]
    %12 = dma.done [#allocation0], 16
    %13 = vsyncpa [#allocation0], 1

// kernel: custom-call
$region0: #{custom-call}
  %s0 = inlined_call_operand.hbm [shape: c64[2,4,16], index: 0, kind: input, shape index: {}]
  %s1 = inlined_call_operand.vmem [shape: f32[2,4,16], index: 1, kind: output, shape index: {}]
  $region1: #{custom-call} parent=0
    #allocation0 [shape = 's32[1]{0}', space=sflag, size = 0x4, scoped, tag = 'scoped memory for custom-call']
    %2 = vsyncpa [#allocation0], 0
    %s4 = sshll.u32 %s0, 4
    %s5 = int_to_ptr.hbm [resolvable:$true] %s4
    %s6 = sshll.u32 %s1, 4
    %s7 = int_to_ptr.vmem [resolvable:$true] %s6
    %9 = dma.hbm_to_vmem [thread:$0]  %s5, 128, %s7, [#allocation0]
    %11 = dma.done [#allocation0], 128
    %12 = vsyncpa [#allocation0], 1

// kernel: custom-call.1
$region0: #{custom-call.1}
  %s0 = inlined_call_operand.hbm [shape: c64[2,4,16], index: 0, kind: input, shape index: {}]
  %s1 = inlined_call_operand.vmem [shape: f32[2,4,16], index: 1, kind: output, shape index: {}]
  %s2 = scalar_lea.hbm %s0, 8
  $region1: #{custom-call.1} parent=0
    #allocation0 [shape = 's32[1]{0}', space=sflag, size = 0x4, scoped, tag = 'scoped memory for custom-call.1']
    %3 = vsyncpa [#allocation0], 0
    %s5 = sshll.u32 %s2, 4
    %s6 = int_to_ptr.hbm [resolvable:$true] %s5
    %s7 = sshll.u32 %s1, 4
    %s8 = int_to_ptr.vmem [resolvable:$true] %s7
    %10 = dma.hbm_to_vmem [thread:$0]  %s6, 128, %s8, [#allocation0]
    %12 = dma.done [#allocation0], 128
    %13 = vsyncpa [#allocation0], 1

// kernel: custom-call.6
$region0: #{custom-call.6}
  %s0 = inlined_call_operand.vmem [shape: f32[2,8,14], index: 0, kind: input, shape index: {}]
  %s1 = inlined_call_operand.vmem [shape: f32[2,8,14], index: 1, kind: input, shape index: {}]
  %s2 = inlined_call_operand.hbm [shape: c64[2,8,14], index: 2, kind: output, shape index: {}]
  %s3 = scalar_lea.hbm %s2, 16
  $region1: #{custom-call.6} parent=0
    #allocation0 [shape = 's32[1]{0}', space=sflag, size = 0x4, scoped, tag = 'scoped memory for custom-call.6']
    %4 = vsyncpa [#allocation0], 0
    %s6 = sshll.u32 %s0, 4
    %s7 = int_to_ptr.vmem [resolvable:$true] %s6
    %s8 = sshll.u32 %s2, 4
    %s9 = int_to_ptr.hbm [resolvable:$true] %s8
    %11 = dma.vmem_to_hbm [thread:$0]  %s7, 256, %s9, [#allocation0]
    %13 = dma.done [#allocation0], 256
    %14 = vsyncpa [#allocation0], 1
  $region2: #{custom-call.6} parent=0
    #allocation1 [shape = 's32[1]{0}', space=sflag, size = 0x4, scoped, tag = 'scoped memory for custom-call.6']
    %15 = vsyncpa [#allocation1], 0
    %s17 = sshll.u32 %s1, 4
    %s18 = int_to_ptr.vmem [resolvable:$true] %s17
    %s19 = sshll.u32 %s3, 4
    %s20 = int_to_ptr.hbm [resolvable:$true] %s19
    %22 = dma.vmem_to_hbm [thread:$0]  %s18, 256, %s20, [#allocation1]
    %24 = dma.done [#allocation1], 256
    %25 = vsyncpa [#allocation1], 1

// kernel: complex_conv1d.1
$region0: #{complex_conv1d.1}
  #allocation0 [shape = 'u32[]', space=smem, size = 0x4, offset = 0x4, fixed_abs, tag = 'smem constant byte address 0x4 - core index']
  #allocation1 [shape = 'u32[72,128]{1,0:T(1,128)}', space=vmem, size = 0x9000, scoped, tag = 'internal scratch']
  #allocation2 [shape = 'f32[16,256]{1,0:T(8,128)}', space=vmem, size = 0x4000, scoped, tag = 'scratch operand']
  %s0 = inlined_call_operand.vmem [shape: f32[8,384], index: 0, kind: input, shape index: {}]
  %s1 = inlined_call_operand.vmem [shape: f32[3,16,8], index: 1, kind: input, shape index: {}]
  %s2 = inlined_call_operand.vmem [shape: f32[16,1], index: 2, kind: input, shape index: {}]
  %s3 = inlined_call_operand.vmem [shape: f32[2,16,128], index: 3, kind: output, shape index: {}]
  %s4 = sld [smem:[#allocation0]]
  $region22: #{complex_conv1d.1} parent=0
    _
  %s6 = ssub.s32 1, %s4
  %s7 = scalar_select 0, %s6, %s4
  // Predicated region
  $region2: #{complex_conv1d.1} parent=0 // pred_check
    _
  $region3: #{complex_conv1d.1} parent=0 // pred_check_branch
    %9 = sbr.rel (0) target = $region5
  $region4: #{complex_conv1d.1} parent=0 // pred_region
    _
  $region5: #{complex_conv1d.1} parent=0 // pred_fallthru
    _
  // Predicated region
  $region6: #{complex_conv1d.1} parent=0 // pred_check
    _
  $region7: #{complex_conv1d.1} parent=0 // pred_check_branch
    %11 = sbr.rel (0) target = $region9
  $region8: #{complex_conv1d.1} parent=0 // pred_region
    _
  $region9: #{complex_conv1d.1} parent=0 // pred_fallthru
    _
  // Predicated region
  $region10: #{complex_conv1d.1} parent=0 // pred_check
    _
  $region11: #{complex_conv1d.1} parent=0 // pred_check_branch
    %13 = sbr.rel (0) target = $region13
  $region12: #{complex_conv1d.1} parent=0 // pred_region
    _
  $region13: #{complex_conv1d.1} parent=0 // pred_fallthru
    _
  %v14 = vld [vmem:[%s2] sm:$0xff]
  %v15 = vld [vmem:[%s2 + $0x8] sm:$0xff]
  %17 = vset.pattern.permute.xlu0 0
  %18 = vperm.xlu0 %17, %v14
  %v19 = vpop.permute.xlu0 %18
  %22 = vset.pattern.permute.xlu0 0
  %23 = vperm.xlu0 %22, %v15
  %v24 = vpop.permute.xlu0 %23
  %26 = vst [vmem:[#allocation2] sm:$0xff] %v19
  %27 = vst [vmem:[#allocation2 + $0x8] sm:$0xff] %v19
  %28 = vst [vmem:[#allocation2 + $0x10] sm:$0xff] %v24
  %29 = vst [vmem:[#allocation2 + $0x18] sm:$0xff] %v24
  %v30 = vld [vmem:[%s0] sm:$0xff]
  %v31 = vld [vmem:[%s0 + $0x8] sm:$0xff]
  %v32 = vld [vmem:[#allocation2] sm:$0xff]
  %v33 = vld [vmem:[#allocation2 + $0x8] sm:$0xff]
  %v34 = vld [vmem:[#allocation2 + $0x10] sm:$0xff]
  %v35 = vld [vmem:[#allocation2 + $0x18] sm:$0xff]
  %v36 = vld [vmem:[%s1] sm:$0xff]
  %v37 = vld [vmem:[%s1 + $0x8] sm:$0xff]
  %vm38 = vcmask 64512
  %v40 = vsel %vm38, %v36, 0
  %v43 = vsel %vm38, %v37, 0
  %45 = vmatpush.msra.mxu0 0.0
  %46 = vmatpush.msra.mxu0 0.0
  %47 = vmatpush.msra.mxu0 0.0
  %48 = vmatpush.msra.mxu0 0.0
  %49 = vmatpush.msra.mxu0 0.0
  %50 = vmatpush.msra.mxu0 0.0
  %51 = vmatpush.msra.mxu0 0.0
  %52 = vmatpush.msra.mxu0 0.0
  %53 = vmatpush.msra.mxu0 0.0
  %54 = vmatpush.msra.mxu0 0.0
  %55 = vmatpush.msra.mxu0 0.0
  %56 = vmatpush.msra.mxu0 0.0
  %57 = vmatpush.msra.mxu0 0.0
  %58 = vmatpush.msra.mxu0 0.0
  %59 = vmatpush.msra.mxu0 0.0
  %60 = vmatpush.msra.mxu0 %v30
  %61 = vmatmul.f32.gmra.mxu0 %v40
  %v62 = vpop.f32.mrf.mxu0
  %v63 = vadd.f32 0.0, %v62
  %64 = vmatmul.f32.gmra.mxu0 %v43
  %v65 = vpop.f32.mrf.mxu0
  %v66 = vadd.f32 0.0, %v65
  %67 = vdwg.mxu0
  %68 = vmatpush.msra.mxu0 0.0
  %69 = vmatpush.msra.mxu0 0.0
  %70 = vmatpush.msra.mxu0 0.0
  %71 = vmatpush.msra.mxu0 0.0
  %72 = vmatpush.msra.mxu0 0.0
  %73 = vmatpush.msra.mxu0 0.0
  %74 = vmatpush.msra.mxu0 0.0
  %75 = vmatpush.msra.mxu0 0.0
  %76 = vmatpush.msra.mxu0 0.0
  %77 = vmatpush.msra.mxu0 0.0
  %78 = vmatpush.msra.mxu0 0.0
  %79 = vmatpush.msra.mxu0 0.0
  %80 = vmatpush.msra.mxu0 0.0
  %81 = vmatpush.msra.mxu0 0.0
  %82 = vmatpush.msra.mxu0 0.0
  %83 = vmatpush.msra.mxu0 %v31
  %84 = vmatmul.f32.gmra.mxu0 %v40
  %v85 = vpop.f32.mrf.mxu0
  %v86 = vadd.f32 0.0, %v85
  %87 = vmatmul.f32.gmra.mxu0 %v43
  %v88 = vpop.f32.mrf.mxu0
  %v89 = vadd.f32 0.0, %v88
  %90 = vdwg.mxu0
  %v91 = vadd.f32 %v32, %v63
  %v92 = vadd.f32 %v33, %v86
  %v93 = vadd.f32 %v34, %v66
  %v94 = vadd.f32 %v35, %v89
  %95 = vst [vmem:[#allocation2] sm:$0xff] %v91
  %96 = vst [vmem:[#allocation2 + $0x8] sm:$0xff] %v92
  %97 = vst [vmem:[#allocation2 + $0x10] sm:$0xff] %v93
  %98 = vst [vmem:[#allocation2 + $0x18] sm:$0xff] %v94
  %v99 = vld [vmem:[%s0] sm:$0xff]
  %v100 = vld [vmem:[%s0 + $0x8] sm:$0xff]
  %v101 = vld [vmem:[%s0 + $0x10] sm:$0xff]
  %v102 = vld [vmem:[#allocation2] sm:$0xff]
  %v103 = vld [vmem:[#allocation2 + $0x8] sm:$0xff]
  %v104 = vld [vmem:[#allocation2 + $0x10] sm:$0xff]
  %v105 = vld [vmem:[#allocation2 + $0x18] sm:$0xff]
  %s106 = scalar_lea.vmem %s1, 16
  %v107 = vld [vmem:[%s106] sm:$0xff]
  %v108 = vld [vmem:[%s106 + $0x8] sm:$0xff]
  %112 = vrot.lane.b32.xlu0 %v99, 127
  %v113 = vpop.permute.xlu0 %112
  %114 = vrot.lane.b32.xlu0 %v100, 127
  %v115 = vpop.permute.xlu0 %114
  %116 = vrot.lane.b32.xlu0 %v101, 127
  %v117 = vpop.permute.xlu0 %116
  %vm118 = vcmask 1039360
  %v119 = vsel %vm118, %v113, %v115
  %v120 = vsel %vm118, %v115, %v117
  %v124 = vsel %vm38, %v107, 0
  %v127 = vsel %vm38, %v108, 0
  %129 = vmatpush.msra.mxu0 0.0
  %130 = vmatpush.msra.mxu0 0.0
  %131 = vmatpush.msra.mxu0 0.0
  %132 = vmatpush.msra.mxu0 0.0
  %133 = vmatpush.msra.mxu0 0.0
  %134 = vmatpush.msra.mxu0 0.0
  %135 = vmatpush.msra.mxu0 0.0
  %136 = vmatpush.msra.mxu0 0.0
  %137 = vmatpush.msra.mxu0 0.0
  %138 = vmatpush.msra.mxu0 0.0
  %139 = vmatpush.msra.mxu0 0.0
  %140 = vmatpush.msra.mxu0 0.0
  %141 = vmatpush.msra.mxu0 0.0
  %142 = vmatpush.msra.mxu0 0.0
  %143 = vmatpush.msra.mxu0 0.0
  %144 = vmatpush.msra.mxu0 %v119
  %145 = vmatmul.f32.gmra.mxu0 %v124
  %v146 = vpop.f32.mrf.mxu0
  %v147 = vadd.f32 0.0, %v146
  %148 = vmatmul.f32.gmra.mxu0 %v127
  %v149 = vpop.f32.mrf.mxu0
  %v150 = vadd.f32 0.0, %v149
  %151 = vdwg.mxu0
  %152 = vmatpush.msra.mxu0 0.0
  %153 = vmatpush.msra.mxu0 0.0
  %154 = vmatpush.msra.mxu0 0.0
  %155 = vmatpush.msra.mxu0 0.0
  %156 = vmatpush.msra.mxu0 0.0
  %157 = vmatpush.msra.mxu0 0.0
  %158 = vmatpush.msra.mxu0 0.0
  %159 = vmatpush.msra.mxu0 0.0
  %160 = vmatpush.msra.mxu0 0.0
  %161 = vmatpush.msra.mxu0 0.0
  %162 = vmatpush.msra.mxu0 0.0
  %163 = vmatpush.msra.mxu0 0.0
  %164 = vmatpush.msra.mxu0 0.0
  %165 = vmatpush.msra.mxu0 0.0
  %166 = vmatpush.msra.mxu0 0.0
  %167 = vmatpush.msra.mxu0 %v120
  %168 = vmatmul.f32.gmra.mxu0 %v124
  %v169 = vpop.f32.mrf.mxu0
  %v170 = vadd.f32 0.0, %v169
  %171 = vmatmul.f32.gmra.mxu0 %v127
  %v172 = vpop.f32.mrf.mxu0
  %v173 = vadd.f32 0.0, %v172
  %174 = vdwg.mxu0
  %v175 = vadd.f32 %v102, %v147
  %v176 = vadd.f32 %v103, %v170
  %v177 = vadd.f32 %v104, %v150
  %v178 = vadd.f32 %v105, %v173
  %179 = vst [vmem:[#allocation2] sm:$0xff] %v175
  %180 = vst [vmem:[#allocation2 + $0x8] sm:$0xff] %v176
  %181 = vst [vmem:[#allocation2 + $0x10] sm:$0xff] %v177
  %182 = vst [vmem:[#allocation2 + $0x18] sm:$0xff] %v178
  %v183 = vld [vmem:[%s0] sm:$0xff]
  %v184 = vld [vmem:[%s0 + $0x8] sm:$0xff]
  %v185 = vld [vmem:[%s0 + $0x10] sm:$0xff]
  %v186 = vld [vmem:[#allocation2] sm:$0xff]
  %v187 = vld [vmem:[#allocation2 + $0x8] sm:$0xff]
  %v188 = vld [vmem:[#allocation2 + $0x10] sm:$0xff]
  %v189 = vld [vmem:[#allocation2 + $0x18] sm:$0xff]
  %s190 = scalar_lea.vmem %s1, 32
  %v191 = vld [vmem:[%s190] sm:$0xff]
  %v192 = vld [vmem:[%s190 + $0x8] sm:$0xff]
  %196 = vrot.lane.b32.xlu0 %v183, 126
  %v197 = vpop.permute.xlu0 %196
  %198 = vrot.lane.b32.xlu0 %v184, 126
  %v199 = vpop.permute.xlu0 %198
  %200 = vrot.lane.b32.xlu0 %v185, 126
  %v201 = vpop.permute.xlu0 %200
  %vm202 = vcmask 1031168
  %v203 = vsel %vm202, %v197, %v199
  %v204 = vsel %vm202, %v199, %v201
  %v208 = vsel %vm38, %v191, 0
  %v211 = vsel %vm38, %v192, 0
  %213 = vmatpush.msra.mxu0 0.0
  %214 = vmatpush.msra.mxu0 0.0
  %215 = vmatpush.msra.mxu0 0.0
  %216 = vmatpush.msra.mxu0 0.0
  %217 = vmatpush.msra.mxu0 0.0
  %218 = vmatpush.msra.mxu0 0.0
  %219 = vmatpush.msra.mxu0 0.0
  %220 = vmatpush.msra.mxu0 0.0
  %221 = vmatpush.msra.mxu0 0.0
  %222 = vmatpush.msra.mxu0 0.0
  %223 = vmatpush.msra.mxu0 0.0
  %224 = vmatpush.msra.mxu0 0.0
  %225 = vmatpush.msra.mxu0 0.0
  %226 = vmatpush.msra.mxu0 0.0
  %227 = vmatpush.msra.mxu0 0.0
  %228 = vmatpush.msra.mxu0 %v203
  %229 = vmatmul.f32.gmra.mxu0 %v208
  %v230 = vpop.f32.mrf.mxu0
  %v231 = vadd.f32 0.0, %v230
  %232 = vmatmul.f32.gmra.mxu0 %v211
  %v233 = vpop.f32.mrf.mxu0
  %v234 = vadd.f32 0.0, %v233
  %235 = vdwg.mxu0
  %236 = vmatpush.msra.mxu0 0.0
  %237 = vmatpush.msra.mxu0 0.0
  %238 = vmatpush.msra.mxu0 0.0
  %239 = vmatpush.msra.mxu0 0.0
  %240 = vmatpush.msra.mxu0 0.0
  %241 = vmatpush.msra.mxu0 0.0
  %242 = vmatpush.msra.mxu0 0.0
  %243 = vmatpush.msra.mxu0 0.0
  %244 = vmatpush.msra.mxu0 0.0
  %245 = vmatpush.msra.mxu0 0.0
  %246 = vmatpush.msra.mxu0 0.0
  %247 = vmatpush.msra.mxu0 0.0
  %248 = vmatpush.msra.mxu0 0.0
  %249 = vmatpush.msra.mxu0 0.0
  %250 = vmatpush.msra.mxu0 0.0
  %251 = vmatpush.msra.mxu0 %v204
  %252 = vmatmul.f32.gmra.mxu0 %v208
  %v253 = vpop.f32.mrf.mxu0
  %v254 = vadd.f32 0.0, %v253
  %255 = vmatmul.f32.gmra.mxu0 %v211
  %v256 = vpop.f32.mrf.mxu0
  %v257 = vadd.f32 0.0, %v256
  %258 = vdwg.mxu0
  %v259 = vadd.f32 %v186, %v231
  %v260 = vadd.f32 %v187, %v254
  %v261 = vadd.f32 %v188, %v234
  %v262 = vadd.f32 %v189, %v257
  %263 = vst [vmem:[#allocation2] sm:$0xff] %v259
  %264 = vst [vmem:[#allocation2 + $0x8] sm:$0xff] %v260
  %265 = vst [vmem:[#allocation2 + $0x10] sm:$0xff] %v261
  %266 = vst [vmem:[#allocation2 + $0x18] sm:$0xff] %v262
  %v267 = vld [vmem:[#allocation2] sm:$0xff]
  %v268 = vld [vmem:[#allocation2 + $0x10] sm:$0xff]
  %269 = vst [vmem:[%s3] sm:$0xff] %v267
  %270 = vst [vmem:[%s3 + $0x8] sm:$0xff] %v268
  %v271 = vld [vmem:[#allocation2 + $0x8] sm:$0xff]
  %v272 = vld [vmem:[#allocation2 + $0x18] sm:$0xff]
  %s273 = scalar_lea.vmem %s3, 16
  %274 = vst [vmem:[%s273] sm:$0xff] %v271
  %275 = vst [vmem:[%s273 + $0x8] sm:$0xff] %v272
  // Predicated region
  $region14: #{complex_conv1d.1} parent=0 // pred_check
    _
  $region15: #{complex_conv1d.1} parent=0 // pred_check_branch
    %277 = sbr.rel (0) target = $region17
  $region16: #{complex_conv1d.1} parent=0 // pred_region
    _
  $region17: #{complex_conv1d.1} parent=0 // pred_fallthru
    _
  // Predicated region
  $region18: #{complex_conv1d.1} parent=0 // pred_check
    _
  $region19: #{complex_conv1d.1} parent=0 // pred_check_branch
    %279 = sbr.rel (0) target = $region21
  $region20: #{complex_conv1d.1} parent=0 // pred_region
    _
  $region21: #{complex_conv1d.1} parent=0 // pred_fallthru
    _

</llo_original>
